<compile_context>
chip_gen: v7x
topology: tpu7x:2x2x1
jax: 0.10.0
libtpu: 0.0.40
codegen_flags: <defaults>
</compile_context>

<pallas_src>
import jax
import jax.numpy as jnp
from jax.experimental import pallas as pl
from jax.experimental.pallas import tpu as pltpu


def _round_up(n, m):
    return ((n + m - 1) // m) * m


def dqn_kernel(x_ref, w1_ref, b1_ref, w2_ref, b2_ref, w3_ref, b3_ref, o_ref):
    # Feature-major: x is (in_features, TB) bf16; lane axis (TB) is dense.
    x = x_ref[...]                                                       # (9, TB) bf16

    # linear1 + relu : (64, 9) @ (9, TB) -> (64, TB), f32 accumulate
    h1 = jnp.dot(w1_ref[...], x, preferred_element_type=jnp.float32) + b1_ref[...]
    h1 = jnp.maximum(h1, 0.0).astype(jnp.bfloat16)

    # linear2 + relu : (32, 64) @ (64, TB) -> (32, TB)
    h2 = jnp.dot(w2_ref[...], h1, preferred_element_type=jnp.float32) + b2_ref[...]
    h2 = jnp.maximum(h2, 0.0).astype(jnp.bfloat16)

    # output layer   : (outputs, 32) @ (32, TB) -> (outputs, TB), lane-dense store
    o_ref[...] = jnp.dot(w3_ref[...], h2, preferred_element_type=jnp.float32) + b3_ref[...]


def dqn_forward(x, params, *, tb=1024):
    """x: (B, 9) any float dtype. Returns (B, outputs) float32."""
    w1, b1, w2, b2, w3, b3 = params          # PyTorch layout: w (out, in), b (out,)
    B = x.shape[0]
    in_features = w1.shape[1]
    outputs = w3.shape[0]

    # bf16 HBM copy of the activations, feature-major (in_features, B).
    xT = x.astype(jnp.float32).astype(jnp.bfloat16).T

    # Batch tile: multiple of 128 so every x/out block is lane-dense; cap at `tb`
    # so large batches stream through a pipelined grid instead of one huge block.
    tb = max(128, (tb // 128) * 128)
    TB = min(tb, _round_up(B, 128))
    B_pad = _round_up(B, TB)
    if B_pad != B:
        xT = jnp.pad(xT, ((0, 0), (0, B_pad - B)))   # zero-padded cols, sliced off below

    # bf16 weights (MXU inputs), f32 biases shaped (out, 1) for lane broadcast.
    w1k = w1.astype(jnp.bfloat16)
    w2k = w2.astype(jnp.bfloat16)
    w3k = w3.astype(jnp.bfloat16)
    b1k = b1.reshape(-1, 1).astype(jnp.float32)
    b2k = b2.reshape(-1, 1).astype(jnp.float32)
    b3k = b3.reshape(-1, 1).astype(jnp.float32)

    grid = (B_pad // TB,)

    def resident(arr):  # grid-invariant block -> stays in VMEM across steps
        return pl.BlockSpec(arr.shape, lambda i: (0, 0))

    outT = pl.pallas_call(
        dqn_kernel,
        out_shape=jax.ShapeDtypeStruct((outputs, B_pad), jnp.float32),
        grid=grid,
        in_specs=[
            pl.BlockSpec((in_features, TB), lambda i: (0, i)),   # stream x over batch
            resident(w1k), resident(b1k),
            resident(w2k), resident(b2k),
            resident(w3k), resident(b3k),
        ],
        out_specs=pl.BlockSpec((outputs, TB), lambda i: (0, i)),  # lane-dense output
        compiler_params=pltpu.CompilerParams(
            dimension_semantics=("parallel",),   # batch sharded across TCs on v7x
        ),
    )(xT, w1k, b1k, w2k, b2k, w3k, b3k)

    return outT[:, :B].T                                          # (B, outputs) f32


def init_params(key, outputs=9):
    """PyTorch nn.Linear-style init: uniform +-1/sqrt(fan_in), w stored (out, in)."""
    def linear(k, fan_in, fan_out):
        kw, kb = jax.random.split(k)
        bound = 1.0 / jnp.sqrt(fan_in)
        w = jax.random.uniform(kw, (fan_out, fan_in), jnp.float32, -bound, bound)
        b = jax.random.uniform(kb, (fan_out,), jnp.float32, -bound, bound)
        return w, b

    k1, k2, k3 = jax.random.split(key, 3)
    w1, b1 = linear(k1, 9, 64)
    w2, b2 = linear(k2, 64, 32)
    w3, b3 = linear(k3, 32, outputs)
    return (w1, b1, w2, b2, w3, b3)


def dqn_reference_f32(x, params):
    """PyTorch-faithful all-f32 forward."""
    w1, b1, w2, b2, w3, b3 = params
    x = x.astype(jnp.float32)
    h1 = jnp.maximum(x @ w1.T + b1, 0.0)
    h2 = jnp.maximum(h1 @ w2.T + b2, 0.0)
    return h2 @ w3.T + b3


def dqn_reference_mixed(x, params):
    """Pure-JAX reference mirroring the kernel numerics (bf16 operands, f32 accum)."""
    w1, b1, w2, b2, w3, b3 = params
    bf = jnp.bfloat16
    xb = x.astype(jnp.float32).astype(bf)
    h1 = jnp.dot(xb, w1.astype(bf).T, preferred_element_type=jnp.float32) + b1
    h1 = jnp.maximum(h1, 0.0).astype(bf)
    h2 = jnp.dot(h1, w2.astype(bf).T, preferred_element_type=jnp.float32) + b2
    h2 = jnp.maximum(h2, 0.0).astype(bf)
    return jnp.dot(h2, w3.astype(bf).T, preferred_element_type=jnp.float32) + b3


if __name__ == "__main__":
    key = jax.random.PRNGKey(0)
    k_params, k_x1, k_x2 = jax.random.split(key, 3)
    params = init_params(k_params, outputs=9)

    # Small deterministic case consistent with the module (feature dim = 9).
    x = jax.random.normal(k_x1, (8, 9), dtype=jnp.float32)
    out = jax.block_until_ready(dqn_forward(x, params))
    assert out.shape == (8, 9)
    assert jnp.allclose(out, dqn_reference_mixed(x, params), atol=1e-4, rtol=1e-4)
    assert jnp.allclose(out, dqn_reference_f32(x, params), atol=5e-2, rtol=5e-2)

    # Second case exercises a multi-step pipelined grid plus batch padding/slicing.
    x2 = jax.random.normal(k_x2, (300, 9), dtype=jnp.float32)
    out2 = jax.block_until_ready(dqn_forward(x2, params, tb=128))
    assert out2.shape == (300, 9)
    assert jnp.allclose(out2, dqn_reference_mixed(x2, params), atol=1e-4, rtol=1e-4)

    print("KERNEL_OK")
</pallas_src>

<mosaic_0001>
module attributes {stable_mosaic.version = 11 : i64} {
  func.func @dqn_kernel(%arg0: i32, %arg1: memref<9x128xbf16, #tpu.memory_space<vmem>>, %arg2: memref<64x9xbf16, #tpu.memory_space<vmem>>, %arg3: memref<64x1xf32, #tpu.memory_space<vmem>>, %arg4: memref<32x64xbf16, #tpu.memory_space<vmem>>, %arg5: memref<32x1xf32, #tpu.memory_space<vmem>>, %arg6: memref<9x32xbf16, #tpu.memory_space<vmem>>, %arg7: memref<9x1xf32, #tpu.memory_space<vmem>>, %arg8: memref<9x128xf32, #tpu.memory_space<vmem>>) attributes {dimension_semantics = [#tpu.dimension_semantics<parallel>], iteration_bounds = array<i64: 1>, scalar_prefetch = 0 : i64, scratch_operands = 0 : i64, tpu.core_type = #tpu.core_type<tc>, window_params = [{transform_indices = @transform_0, window_bounds = array<i64: 9, 128>}, {pipeline_mode = #tpu.pipeline_mode<synchronous>, transform_indices = @transform_1, window_bounds = array<i64: 64, 9>}, {pipeline_mode = #tpu.pipeline_mode<synchronous>, transform_indices = @transform_2, window_bounds = array<i64: 64, 1>}, {pipeline_mode = #tpu.pipeline_mode<synchronous>, transform_indices = @transform_3, window_bounds = array<i64: 32, 64>}, {pipeline_mode = #tpu.pipeline_mode<synchronous>, transform_indices = @transform_4, window_bounds = array<i64: 32, 1>}, {pipeline_mode = #tpu.pipeline_mode<synchronous>, transform_indices = @transform_5, window_bounds = array<i64: 9, 32>}, {pipeline_mode = #tpu.pipeline_mode<synchronous>, transform_indices = @transform_6, window_bounds = array<i64: 9, 1>}, {transform_indices = @transform_7, window_bounds = array<i64: 9, 128>}]} {
    %c0 = arith.constant 0 : index
    %c0_0 = arith.constant 0 : index
    %0 = vector.load %arg1[%c0, %c0_0] : memref<9x128xbf16, #tpu.memory_space<vmem>>, vector<9x128xbf16>
    %c0_1 = arith.constant 0 : index
    %c0_2 = arith.constant 0 : index
    %1 = vector.load %arg2[%c0_1, %c0_2] : memref<64x9xbf16, #tpu.memory_space<vmem>>, vector<64x9xbf16>
    %cst = arith.constant dense<0.000000e+00> : vector<64x128xf32>
    %2 = tpu.matmul %1, %0, %cst {dimension_numbers = #tpu.dot_dimension_numbers<[1], [0], [0], [1], [0, 0, 1, 1], [], []>} : vector<64x9xbf16>, vector<9x128xbf16>, vector<64x128xf32> -> vector<64x128xf32>
    %c0_3 = arith.constant 0 : index
    %c0_4 = arith.constant 0 : index
    %3 = vector.load %arg3[%c0_3, %c0_4] : memref<64x1xf32, #tpu.memory_space<vmem>>, vector<64x1xf32>
    %4 = vector.broadcast %3 : vector<64x1xf32> to vector<64x128xf32>
    %5 = arith.addf %2, %4 : vector<64x128xf32>
    %cst_5 = arith.constant 0.000000e+00 : f32
    %6 = vector.broadcast %cst_5 : f32 to vector<64x128xf32>
    %7 = arith.maximumf %5, %6 : vector<64x128xf32>
    %8 = arith.truncf %7 : vector<64x128xf32> to vector<64x128xbf16>
    %c0_6 = arith.constant 0 : index
    %c0_7 = arith.constant 0 : index
    %9 = vector.load %arg4[%c0_6, %c0_7] : memref<32x64xbf16, #tpu.memory_space<vmem>>, vector<32x64xbf16>
    %cst_8 = arith.constant dense<0.000000e+00> : vector<32x128xf32>
    %10 = tpu.matmul %9, %8, %cst_8 {dimension_numbers = #tpu.dot_dimension_numbers<[1], [0], [0], [1], [0, 0, 1, 1], [], []>} : vector<32x64xbf16>, vector<64x128xbf16>, vector<32x128xf32> -> vector<32x128xf32>
    %c0_9 = arith.constant 0 : index
    %c0_10 = arith.constant 0 : index
    %11 = vector.load %arg5[%c0_9, %c0_10] : memref<32x1xf32, #tpu.memory_space<vmem>>, vector<32x1xf32>
    %12 = vector.broadcast %11 : vector<32x1xf32> to vector<32x128xf32>
    %13 = arith.addf %10, %12 : vector<32x128xf32>
    %cst_11 = arith.constant 0.000000e+00 : f32
    %14 = vector.broadcast %cst_11 : f32 to vector<32x128xf32>
    %15 = arith.maximumf %13, %14 : vector<32x128xf32>
    %16 = arith.truncf %15 : vector<32x128xf32> to vector<32x128xbf16>
    %c0_12 = arith.constant 0 : index
    %c0_13 = arith.constant 0 : index
    %17 = vector.load %arg6[%c0_12, %c0_13] : memref<9x32xbf16, #tpu.memory_space<vmem>>, vector<9x32xbf16>
    %cst_14 = arith.constant dense<0.000000e+00> : vector<9x128xf32>
    %18 = tpu.matmul %17, %16, %cst_14 {dimension_numbers = #tpu.dot_dimension_numbers<[1], [0], [0], [1], [0, 0, 1, 1], [], []>} : vector<9x32xbf16>, vector<32x128xbf16>, vector<9x128xf32> -> vector<9x128xf32>
    %c0_15 = arith.constant 0 : index
    %c0_16 = arith.constant 0 : index
    %19 = vector.load %arg7[%c0_15, %c0_16] : memref<9x1xf32, #tpu.memory_space<vmem>>, vector<9x1xf32>
    %20 = vector.broadcast %19 : vector<9x1xf32> to vector<9x128xf32>
    %21 = arith.addf %18, %20 : vector<9x128xf32>
    %c0_17 = arith.constant 0 : index
    %c0_18 = arith.constant 0 : index
    %22 = vector.load %arg8[%c0_17, %c0_18] : memref<9x128xf32, #tpu.memory_space<vmem>>, vector<9x128xf32>
    tpu.vector_store %arg8[%c0_17, %c0_18], %21 {strides = array<i32>} : memref<9x128xf32, #tpu.memory_space<vmem>>, vector<9x128xf32>,
    return
  }
  func.func @transform_0(%arg0: i32) -> (i32, i32) {
    %c0_i32 = arith.constant 0 : i32
    %c0_i32_0 = arith.constant 0 : i32
    return %c0_i32, %arg0 : i32, i32
  }
  func.func @transform_1(%arg0: i32) -> (i32, i32) {
    %c0_i32 = arith.constant 0 : i32
    %c0_i32_0 = arith.constant 0 : i32
    %c0_i32_1 = arith.constant 0 : i32
    return %c0_i32, %c0_i32_0 : i32, i32
  }
  func.func @transform_2(%arg0: i32) -> (i32, i32) {
    %c0_i32 = arith.constant 0 : i32
    %c0_i32_0 = arith.constant 0 : i32
    %c0_i32_1 = arith.constant 0 : i32
    return %c0_i32, %c0_i32_0 : i32, i32
  }
  func.func @transform_3(%arg0: i32) -> (i32, i32) {
    %c0_i32 = arith.constant 0 : i32
    %c0_i32_0 = arith.constant 0 : i32
    %c0_i32_1 = arith.constant 0 : i32
    return %c0_i32, %c0_i32_0 : i32, i32
  }
  func.func @transform_4(%arg0: i32) -> (i32, i32) {
    %c0_i32 = arith.constant 0 : i32
    %c0_i32_0 = arith.constant 0 : i32
    %c0_i32_1 = arith.constant 0 : i32
    return %c0_i32, %c0_i32_0 : i32, i32
  }
  func.func @transform_5(%arg0: i32) -> (i32, i32) {
    %c0_i32 = arith.constant 0 : i32
    %c0_i32_0 = arith.constant 0 : i32
    %c0_i32_1 = arith.constant 0 : i32
    return %c0_i32, %c0_i32_0 : i32, i32
  }
  func.func @transform_6(%arg0: i32) -> (i32, i32) {
    %c0_i32 = arith.constant 0 : i32
    %c0_i32_0 = arith.constant 0 : i32
    %c0_i32_1 = arith.constant 0 : i32
    return %c0_i32, %c0_i32_0 : i32, i32
  }
  func.func @transform_7(%arg0: i32) -> (i32, i32) {
    %c0_i32 = arith.constant 0 : i32
    %c0_i32_0 = arith.constant 0 : i32
    return %c0_i32, %arg0 : i32, i32
  }
}

</mosaic_0001>

<llo_original>
// kernel: tpu_custom_call.1
$region0: #{tpu_custom_call.1}
  #allocation0 [shape = 'u32[]', space=smem, size = 0x4, offset = 0x4, fixed_abs, tag = 'smem constant byte address 0x4 - core index']
  #allocation1 [shape = 'u32[144,128]{1,0:T(1,128)}', space=vmem, size = 0x12000, scoped, tag = 'internal scratch']
  %s0 = inlined_call_operand.vmem [shape: bf16[9,128], index: 0, kind: input, shape index: {}]
  %s1 = inlined_call_operand.vmem [shape: bf16[64,9], index: 1, kind: input, shape index: {}]
  %s2 = inlined_call_operand.vmem [shape: f32[64,1], index: 2, kind: input, shape index: {}]
  %s3 = inlined_call_operand.vmem [shape: bf16[32,64], index: 3, kind: input, shape index: {}]
  %s4 = inlined_call_operand.vmem [shape: f32[32,1], index: 4, kind: input, shape index: {}]
  %s5 = inlined_call_operand.vmem [shape: bf16[9,32], index: 5, kind: input, shape index: {}]
  %s6 = inlined_call_operand.vmem [shape: f32[9,1], index: 6, kind: input, shape index: {}]
  %s7 = inlined_call_operand.hbm [shape: f32[9,128], index: 7, kind: output, shape index: {}]
  %s8 = sld [smem:[#allocation0]]
  $region38: #{tpu_custom_call.1} parent=0
    _
  %s10 = ssub.s32 1, %s8
  %s11 = scalar_select 0, %s10, %s8
  $region1: #{tpu_custom_call.1} parent=0
    #allocation2 [shape = 'u8[8192]{0}', space=vmem, size = 0x2000, scoped, tag = 'output window, operand 0, single buffered']
    #allocation3 [shape = 's32[1]{0}', space=sflag, size = 0x4, scoped, tag = 'scoped memory for tpu_custom_call.1']
    %12 = vsyncpa [#allocation3], 0
    // Predicated region
    $region2: #{tpu_custom_call.1} parent=1 // pred_check
      _
    $region3: #{tpu_custom_call.1} parent=1 // pred_check_branch
      %14 = sbr.rel (0) target = $region5
    $region4: #{tpu_custom_call.1} parent=1 // pred_region
      _
    $region5: #{tpu_custom_call.1} parent=1 // pred_fallthru
      _
    // Predicated region
    $region6: #{tpu_custom_call.1} parent=1 // pred_check
      _
    $region7: #{tpu_custom_call.1} parent=1 // pred_check_branch
      %16 = sbr.rel (0) target = $region9
    $region8: #{tpu_custom_call.1} parent=1 // pred_region
      _
    $region9: #{tpu_custom_call.1} parent=1 // pred_fallthru
      _
    // Predicated region
    $region10: #{tpu_custom_call.1} parent=1 // pred_check
      _
    $region11: #{tpu_custom_call.1} parent=1 // pred_check_branch
      %18 = sbr.rel (0) target = $region13
    $region12: #{tpu_custom_call.1} parent=1 // pred_region
      _
    $region13: #{tpu_custom_call.1} parent=1 // pred_fallthru
      _
    // Predicated region
    $region14: #{tpu_custom_call.1} parent=1 // pred_check
      _
    $region15: #{tpu_custom_call.1} parent=1 // pred_check_branch
      %20 = sbr.rel (0) target = $region17
    $region16: #{tpu_custom_call.1} parent=1 // pred_region
      _
    $region17: #{tpu_custom_call.1} parent=1 // pred_fallthru
      _
    // Predicated region
    $region18: #{tpu_custom_call.1} parent=1 // pred_check
      _
    $region19: #{tpu_custom_call.1} parent=1 // pred_check_branch
      %22 = sbr.rel (0) target = $region21
    $region20: #{tpu_custom_call.1} parent=1 // pred_region
      _
    $region21: #{tpu_custom_call.1} parent=1 // pred_fallthru
      _
    // Predicated region
    $region22: #{tpu_custom_call.1} parent=1 // pred_check
      _
    $region23: #{tpu_custom_call.1} parent=1 // pred_check_branch
      %24 = sbr.rel (0) target = $region25
    $region24: #{tpu_custom_call.1} parent=1 // pred_region
      _
    $region25: #{tpu_custom_call.1} parent=1 // pred_fallthru
      _
    // Predicated region
    $region26: #{tpu_custom_call.1} parent=1 // pred_check
      _
    $region27: #{tpu_custom_call.1} parent=1 // pred_check_branch
      %26 = sbr.rel (0) target = $region29
    $region28: #{tpu_custom_call.1} parent=1 // pred_region
      _
    $region29: #{tpu_custom_call.1} parent=1 // pred_fallthru
      _
    %v28 = vld [vmem:[%s0] sm:$0xf]
    %v29 = vld [vmem:[%s0 + $0x4] sm:$0x1]
    %v30 = vld [vmem:[%s1] sm:$0xf]
    %v31 = vld [vmem:[%s1 + $0x4] sm:$0xf]
    %v32 = vld [vmem:[%s1 + $0x8] sm:$0xf]
    %v33 = vld [vmem:[%s1 + $0xc] sm:$0xf]
    %v34 = vld [vmem:[%s1 + $0x10] sm:$0xf]
    %v35 = vld [vmem:[%s1 + $0x14] sm:$0xf]
    %v36 = vld [vmem:[%s1 + $0x18] sm:$0xf]
    %v37 = vld [vmem:[%s1 + $0x1c] sm:$0xf]
    %v38 = vld [vmem:[%s2] sm:$0xff]
    %v39 = vld [vmem:[%s2 + $0x8] sm:$0xff]
    %v40 = vld [vmem:[%s2 + $0x10] sm:$0xff]
    %v41 = vld [vmem:[%s2 + $0x18] sm:$0xff]
    %v42 = vld [vmem:[%s2 + $0x20] sm:$0xff]
    %v43 = vld [vmem:[%s2 + $0x28] sm:$0xff]
    %v44 = vld [vmem:[%s2 + $0x30] sm:$0xff]
    %v45 = vld [vmem:[%s2 + $0x38] sm:$0xff]
    %47 = vset.pattern.permute.xlu0 0
    %48 = vperm.xlu0 %47, %v38
    %v49 = vpop.permute.xlu0 %48
    %52 = vset.pattern.permute.xlu0 0
    %53 = vperm.xlu0 %52, %v39
    %v54 = vpop.permute.xlu0 %53
    %57 = vset.pattern.permute.xlu0 0
    %58 = vperm.xlu0 %57, %v40
    %v59 = vpop.permute.xlu0 %58
    %62 = vset.pattern.permute.xlu0 0
    %63 = vperm.xlu0 %62, %v41
    %v64 = vpop.permute.xlu0 %63
    %67 = vset.pattern.permute.xlu0 0
    %68 = vperm.xlu0 %67, %v42
    %v69 = vpop.permute.xlu0 %68
    %72 = vset.pattern.permute.xlu0 0
    %73 = vperm.xlu0 %72, %v43
    %v74 = vpop.permute.xlu0 %73
    %77 = vset.pattern.permute.xlu0 0
    %78 = vperm.xlu0 %77, %v44
    %v79 = vpop.permute.xlu0 %78
    %82 = vset.pattern.permute.xlu0 0
    %83 = vperm.xlu0 %82, %v45
    %v84 = vpop.permute.xlu0 %83
    %v94 = vunpack.c.l.b16 %v30
    %v95 = vunpack.c.l.b16 %v31
    %v96 = vunpack.c.l.b16 %v32
    %v97 = vunpack.c.l.b16 %v33
    %v98 = vunpack.c.l.b16 %v34
    %v99 = vunpack.c.l.b16 %v35
    %v100 = vunpack.c.l.b16 %v36
    %v101 = vunpack.c.l.b16 %v37
    %v102 = vpack.c.b16 %v95, %v94
    %v103 = vpack.c.b16 %v97, %v96
    %v104 = vpack.c.b16 %v99, %v98
    %v105 = vpack.c.b16 %v101, %v100
    %v108 = vunpack.c.l.b16 %v28
    %v109 = vunpack.c.l.b16 %v29
    %v110 = vpack.c.b16 %v109, %v108
    %vm111 = vcmask 72704
    %v113 = vsel %vm111, %v102, 0
    %v116 = vsel %vm111, %v103, 0
    %v119 = vsel %vm111, %v104, 0
    %v122 = vsel %vm111, %v105, 0
    %vm124 = vcmask 1043456
    %vm125 = vcmask 1044480
    %v126 = vsel %vm124, 4294967295, 65535
    %v127 = vsel %vm125, %v126, 0
    %v129 = vand.u32 %v110, %v127
    %131 = vmatprep.subr.bf16.mxu0 0
    %132 = vmatpush1.bf16.msra.mxu0 %v129
    %133 = vmatprep.subr.bf16.mxu0 0
    %134 = vmatpush1.bf16.msra.mxu0 0
    %135 = vmatprep.subr.bf16.mxu0 0
    %136 = vmatpush1.bf16.msra.mxu0 0
    %137 = vmatprep.subr.bf16.mxu0 0
    %138 = vmatpush1.bf16.msra.mxu0 0
    %139 = vmatprep.subr.bf16.mxu0 0
    %140 = vmatpush1.bf16.msra.mxu0 0
    %141 = vmatprep.subr.bf16.mxu0 0
    %142 = vmatpush1.bf16.msra.mxu0 0
    %143 = vmatprep.subr.bf16.mxu0 0
    %144 = vmatpush1.bf16.msra.mxu0 0
    %145 = vmatprep.subr.bf16.mxu0 0
    %146 = vmatpush1.bf16.msra.mxu0 0
    %147 = vmatprep.subr.bf16.mxu0 0
    %148 = vmatpush1.bf16.msra.mxu0 0
    %149 = vmatprep.subr.bf16.mxu0 0
    %150 = vmatpush1.bf16.msra.mxu0 0
    %151 = vmatprep.subr.bf16.mxu0 0
    %152 = vmatpush1.bf16.msra.mxu0 0
    %153 = vmatprep.subr.bf16.mxu0 0
    %154 = vmatpush1.bf16.msra.mxu0 0
    %155 = vmatprep.subr.bf16.mxu0 0
    %156 = vmatpush1.bf16.msra.mxu0 0
    %157 = vmatprep.subr.bf16.mxu0 0
    %158 = vmatpush1.bf16.msra.mxu0 0
    %159 = vmatprep.subr.bf16.mxu0 0
    %160 = vmatpush1.bf16.msra.mxu0 0
    %161 = vmatprep.subr.bf16.mxu0 0
    %162 = vmatpush1.bf16.msra.mxu0 0
    %163 = vmatprep.mubr.bf16.mxu0 0
    %164 = vmatmul.mubr.bf16.gmra.mrb[0].mxu0 %v113
    %v165 = vpop.f32.mrb[0].mxu0
    %v166 = vadd.f32 %v49, %v165
    %v167 = vpop.f32.mrb[0].mxu0
    %v168 = vpop.f32.mrb[0].mxu0
    %v169 = vadd.f32 %v54, %v168
    %v170 = vpop.f32.mrb[0].mxu0
    %171 = vmatprep.mubr.bf16.mxu0 0
    %172 = vmatmul.mubr.bf16.gmra.mrb[0].mxu0 %v116
    %v173 = vpop.f32.mrb[0].mxu0
    %v174 = vadd.f32 %v59, %v173
    %v175 = vpop.f32.mrb[0].mxu0
    %v176 = vpop.f32.mrb[0].mxu0
    %v177 = vadd.f32 %v64, %v176
    %v178 = vpop.f32.mrb[0].mxu0
    %179 = vmatprep.mubr.bf16.mxu0 0
    %180 = vmatmul.mubr.bf16.gmra.mrb[0].mxu0 %v119
    %v181 = vpop.f32.mrb[0].mxu0
    %v182 = vadd.f32 %v69, %v181
    %v183 = vpop.f32.mrb[0].mxu0
    %v184 = vpop.f32.mrb[0].mxu0
    %v185 = vadd.f32 %v74, %v184
    %v186 = vpop.f32.mrb[0].mxu0
    %187 = vmatprep.mubr.bf16.mxu0 0
    %188 = vmatmul.mubr.bf16.gmra.mrb[0].mxu0 %v122
    %v189 = vpop.f32.mrb[0].mxu0
    %v190 = vadd.f32 %v79, %v189
    %v191 = vpop.f32.mrb[0].mxu0
    %v192 = vpop.f32.mrb[0].mxu0
    %v193 = vadd.f32 %v84, %v192
    %v194 = vpop.f32.mrb[0].mxu0
    %195 = vdwg.mxu0
    %v196 = vmax.f32 %v166, 0.0
    %v197 = vmax.f32 %v169, 0.0
    %v198 = vmax.f32 %v174, 0.0
    %v199 = vmax.f32 %v177, 0.0
    %v200 = vmax.f32 %v182, 0.0
    %v201 = vmax.f32 %v185, 0.0
    %v202 = vmax.f32 %v190, 0.0
    %v203 = vmax.f32 %v193, 0.0
    %v204 = vpack.c.bf16 %v197, %v196
    %v205 = vpack.c.bf16 %v199, %v198
    %v206 = vpack.c.bf16 %v201, %v200
    %v207 = vpack.c.bf16 %v203, %v202
    %v208 = vld [vmem:[%s3] sm:$0xf]
    %v209 = vld [vmem:[%s3 + $0x4] sm:$0xf]
    %v210 = vld [vmem:[%s3 + $0x8] sm:$0xf]
    %v211 = vld [vmem:[%s3 + $0xc] sm:$0xf]
    %v212 = vld [vmem:[%s4] sm:$0xff]
    %v213 = vld [vmem:[%s4 + $0x8] sm:$0xff]
    %v214 = vld [vmem:[%s4 + $0x10] sm:$0xff]
    %v215 = vld [vmem:[%s4 + $0x18] sm:$0xff]
    %217 = vset.pattern.permute.xlu0 0
    %218 = vperm.xlu0 %217, %v212
    %v219 = vpop.permute.xlu0 %218
    %222 = vset.pattern.permute.xlu0 0
    %223 = vperm.xlu0 %222, %v213
    %v224 = vpop.permute.xlu0 %223
    %227 = vset.pattern.permute.xlu0 0
    %228 = vperm.xlu0 %227, %v214
    %v229 = vpop.permute.xlu0 %228
    %232 = vset.pattern.permute.xlu0 0
    %233 = vperm.xlu0 %232, %v215
    %v234 = vpop.permute.xlu0 %233
    %v240 = vunpack.c.l.b16 %v208
    %v241 = vunpack.c.l.b16 %v209
    %v242 = vunpack.c.l.b16 %v210
    %v243 = vunpack.c.l.b16 %v211
    %v244 = vpack.c.b16 %v241, %v240
    %v245 = vpack.c.b16 %v243, %v242
    %vm246 = vcmask 523264
    %v248 = vsel %vm246, %v244, 0
    %v251 = vsel %vm246, %v245, 0
    %253 = vmatprep.subr.bf16.mxu0 0
    %254 = vmatpush1.bf16.msra.mxu0 %v204
    %255 = vmatprep.subr.bf16.mxu0 0
    %256 = vmatpush1.bf16.msra.mxu0 %v205
    %257 = vmatprep.subr.bf16.mxu0 0
    %258 = vmatpush1.bf16.msra.mxu0 %v206
    %259 = vmatprep.subr.bf16.mxu0 0
    %260 = vmatpush1.bf16.msra.mxu0 %v207
    %261 = vmatprep.subr.bf16.mxu0 0
    %262 = vmatpush1.bf16.msra.mxu0 0
    %263 = vmatprep.subr.bf16.mxu0 0
    %264 = vmatpush1.bf16.msra.mxu0 0
    %265 = vmatprep.subr.bf16.mxu0 0
    %266 = vmatpush1.bf16.msra.mxu0 0
    %267 = vmatprep.subr.bf16.mxu0 0
    %268 = vmatpush1.bf16.msra.mxu0 0
    %269 = vmatprep.subr.bf16.mxu0 0
    %270 = vmatpush1.bf16.msra.mxu0 0
    %271 = vmatprep.subr.bf16.mxu0 0
    %272 = vmatpush1.bf16.msra.mxu0 0
    %273 = vmatprep.subr.bf16.mxu0 0
    %274 = vmatpush1.bf16.msra.mxu0 0
    %275 = vmatprep.subr.bf16.mxu0 0
    %276 = vmatpush1.bf16.msra.mxu0 0
    %277 = vmatprep.subr.bf16.mxu0 0
    %278 = vmatpush1.bf16.msra.mxu0 0
    %279 = vmatprep.subr.bf16.mxu0 0
    %280 = vmatpush1.bf16.msra.mxu0 0
    %281 = vmatprep.subr.bf16.mxu0 0
    %282 = vmatpush1.bf16.msra.mxu0 0
    %283 = vmatprep.subr.bf16.mxu0 0
    %284 = vmatpush1.bf16.msra.mxu0 0
    %285 = vmatprep.mubr.bf16.mxu0 0
    %286 = vmatmul.mubr.bf16.gmra.mrb[0].mxu0 %v248
    %v287 = vpop.f32.mrb[0].mxu0
    %v288 = vadd.f32 %v219, %v287
    %v289 = vpop.f32.mrb[0].mxu0
    %v290 = vpop.f32.mrb[0].mxu0
    %v291 = vadd.f32 %v224, %v290
    %v292 = vpop.f32.mrb[0].mxu0
    %293 = vmatprep.mubr.bf16.mxu0 0
    %294 = vmatmul.mubr.bf16.gmra.mrb[0].mxu0 %v251
    %v295 = vpop.f32.mrb[0].mxu0
    %v296 = vadd.f32 %v229, %v295
    %v297 = vpop.f32.mrb[0].mxu0
    %v298 = vpop.f32.mrb[0].mxu0
    %v299 = vadd.f32 %v234, %v298
    %v300 = vpop.f32.mrb[0].mxu0
    %301 = vdwg.mxu0
    %v302 = vmax.f32 %v288, 0.0
    %v303 = vmax.f32 %v291, 0.0
    %v304 = vmax.f32 %v296, 0.0
    %v305 = vmax.f32 %v299, 0.0
    %v306 = vpack.c.bf16 %v303, %v302
    %v307 = vpack.c.bf16 %v305, %v304
    %v308 = vld [vmem:[%s5] sm:$0xf]
    %v309 = vld [vmem:[%s5 + $0x4] sm:$0x1]
    %v310 = vld [vmem:[%s6] sm:$0xff]
    %v311 = vld [vmem:[%s6 + $0x8] sm:$0x1]
    %313 = vset.pattern.permute.xlu0 0
    %314 = vperm.xlu0 %313, %v310
    %v315 = vpop.permute.xlu0 %314
    %318 = vset.pattern.permute.xlu0 0
    %319 = vperm.xlu0 %318, %v311
    %v320 = vpop.permute.xlu0 %319
    %v324 = vunpack.c.l.b16 %v308
    %v325 = vunpack.c.l.b16 %v309
    %v326 = vpack.c.b16 %v325, %v324
    %vm327 = vcmask 261120
    %v329 = vsel %vm327, %v326, 0
    %331 = vmatprep.subr.bf16.mxu0 0
    %332 = vmatpush1.bf16.msra.mxu0 %v306
    %333 = vmatprep.subr.bf16.mxu0 0
    %334 = vmatpush1.bf16.msra.mxu0 %v307
    %335 = vmatprep.subr.bf16.mxu0 0
    %336 = vmatpush1.bf16.msra.mxu0 0
    %337 = vmatprep.subr.bf16.mxu0 0
    %338 = vmatpush1.bf16.msra.mxu0 0
    %339 = vmatprep.subr.bf16.mxu0 0
    %340 = vmatpush1.bf16.msra.mxu0 0
    %341 = vmatprep.subr.bf16.mxu0 0
    %342 = vmatpush1.bf16.msra.mxu0 0
    %343 = vmatprep.subr.bf16.mxu0 0
    %344 = vmatpush1.bf16.msra.mxu0 0
    %345 = vmatprep.subr.bf16.mxu0 0
    %346 = vmatpush1.bf16.msra.mxu0 0
    %347 = vmatprep.subr.bf16.mxu0 0
    %348 = vmatpush1.bf16.msra.mxu0 0
    %349 = vmatprep.subr.bf16.mxu0 0
    %350 = vmatpush1.bf16.msra.mxu0 0
    %351 = vmatprep.subr.bf16.mxu0 0
    %352 = vmatpush1.bf16.msra.mxu0 0
    %353 = vmatprep.subr.bf16.mxu0 0
    %354 = vmatpush1.bf16.msra.mxu0 0
    %355 = vmatprep.subr.bf16.mxu0 0
    %356 = vmatpush1.bf16.msra.mxu0 0
    %357 = vmatprep.subr.bf16.mxu0 0
    %358 = vmatpush1.bf16.msra.mxu0 0
    %359 = vmatprep.subr.bf16.mxu0 0
    %360 = vmatpush1.bf16.msra.mxu0 0
    %361 = vmatprep.subr.bf16.mxu0 0
    %362 = vmatpush1.bf16.msra.mxu0 0
    %363 = vmatprep.mubr.bf16.mxu0 0
    %364 = vmatmul.mubr.bf16.gmra.mrb[0].mxu0 %v329
    %v365 = vpop.f32.mrb[0].mxu0
    %v366 = vadd.f32 %v315, %v365
    %v367 = vpop.f32.mrb[0].mxu0
    %v368 = vpop.f32.mrb[0].mxu0
    %v369 = vadd.f32 %v320, %v368
    %v370 = vpop.f32.mrb[0].mxu0
    %371 = vdwg.mxu0
    %372 = vst [vmem:[#allocation2] sm:$0xff] %v366
    %373 = vst [vmem:[#allocation2 + $0x8] sm:$0x1] %v369
    // Predicated region
    $region30: #{tpu_custom_call.1} parent=1 // pred_check
      _
    $region31: #{tpu_custom_call.1} parent=1 // pred_check_branch
      %375 = sbr.rel (0) target = $region33
    $region32: #{tpu_custom_call.1} parent=1 // pred_region
      %s377 = ssub.s32 256, 256
      %378 = vsyncadd [#allocation3], %s377
      %s379 = sshll.u32 [#allocation2], 4
      %s380 = int_to_ptr.vmem [resolvable:$true] %s379
      %385 = dma.vmem_to_hbm [thread:$0]  %s380, 256, %s7, [#allocation3], 128, 128, 8
    $region33: #{tpu_custom_call.1} parent=1 // pred_fallthru
      _
    // Predicated region
    $region34: #{tpu_custom_call.1} parent=1 // pred_check
      _
    $region35: #{tpu_custom_call.1} parent=1 // pred_check_branch
      %387 = sbr.rel (0) target = $region37
    $region36: #{tpu_custom_call.1} parent=1 // pred_region
      %388 = dma.done [#allocation3], 256
    $region37: #{tpu_custom_call.1} parent=1 // pred_fallthru
      _
    %389 = vsyncpa [#allocation3], 1

</llo_original>
